<compile_context>
chip_gen: v7x
topology: tpu7x:2x2x1
jax: 0.10.0
libtpu: 0.0.40
codegen_flags: <defaults>
</compile_context>

<pallas_src>
import functools

import jax
import jax.numpy as jnp
from jax.experimental import pallas as pl
from jax.experimental.pallas import tpu as pltpu

_LANE = 128
_SUBLANE = 8
_MIN_BLOCK_ELEMS = _LANE * _SUBLANE          # 1024 elems = one f32 vreg
_TARGET_BLOCK_ELEMS = 512 * 1024             # 2 MiB f32 per input block


def _detect_v7x():
    try:
        kind = jax.devices()[0].device_kind.lower()
    except Exception:
        return False
    return ("v7" in kind) or ("7x" in kind)


_IS_V7X = _detect_v7x()


def _custom_loss_kernel(p_ref, r_ref, out_ref, acc_d_ref, acc_r_ref, *, nb):
    s = pl.program_id(0)            # shard ('parallel') index
    k = pl.program_id(1)            # reduction ('arbitrary') step
    steps = pl.num_programs(1)

    @pl.when(k == 0)
    def _init():
        acc_d_ref[...] = jnp.zeros_like(acc_d_ref)
        acc_r_ref[...] = jnp.zeros_like(acc_r_ref)

    # Global block id; the last shard may have a clamped out-of-range step
    # (its block index is clamped in the index_map) -> mask it out here.
    g = s * steps + k

    @pl.when(g < nb)
    def _accumulate():
        p = p_ref[...].astype(jnp.float32)
        r = r_ref[...].astype(jnp.float32)
        d = p - r
        # Fold the whole block into a fixed (8,128) accumulator: same VALU
        # add count, but scratch stays ~4 KiB per accumulator.
        acc_d_ref[...] += jnp.sum((d * d).reshape(-1, _SUBLANE, _LANE), axis=0)
        acc_r_ref[...] += jnp.sum((r * r).reshape(-1, _SUBLANE, _LANE), axis=0)

    @pl.when(k == steps - 1)
    def _finalize():
        # Single cross-lane (XLU) reduce of one vreg per accumulator.
        out_ref[0, 0] = jnp.sum(acc_d_ref[...])
        out_ref[0, 1] = jnp.sum(acc_r_ref[...])


def _custom_loss_impl(pred, real, *, block_elems=None, num_shards=None):
    """Pallas equivalent of CustomLoss.forward(pred, real) -> scalar."""
    assert pred.shape == real.shape and pred.ndim == 2
    n = pred.shape[1]
    assert n >= 1

    # Only row 0 of each input participates (keep the input dtype for DMA).
    p0 = pred[0]
    r0 = real[0]

    # Pick a lane/sublane-dense block: (block_rows, 128), block_rows % 8 == 0.
    if block_elems is None:
        block_elems = _MIN_BLOCK_ELEMS
        while block_elems < _TARGET_BLOCK_ELEMS and block_elems * 2 <= n:
            block_elems *= 2
    assert block_elems % _MIN_BLOCK_ELEMS == 0, block_elems

    # Tiny rows only: zero-pad up to one block so the kernel always runs.
    # Zero padding is exact (adds 0 to both sums of squares).
    if n < block_elems:
        pad = block_elems - n
        p0 = jnp.pad(p0, (0, pad))
        r0 = jnp.pad(r0, (0, pad))
        n_eff = block_elems
    else:
        n_eff = n

    nb = n_eff // block_elems            # number of full blocks
    prefix = nb * block_elems

    block_rows = block_elems // _LANE
    rows = prefix // _LANE
    # Full-block prefix as a lane-dense (rows, 128) slab — a row-major
    # reshape of a contiguous prefix, no whole-row pad materialization.
    p2 = p0[:prefix].reshape(rows, _LANE)
    r2 = r0[:prefix].reshape(rows, _LANE)

    # Tail (< block_elems elements): tiny pure-JAX reduction, fused by XLA.
    p_tail = p0[prefix:].astype(jnp.float32)
    r_tail = r0[prefix:].astype(jnp.float32)
    d_tail = p_tail - r_tail
    tail_d = jnp.sum(d_tail * d_tail)
    tail_r = jnp.sum(r_tail * r_tail)

    # 2-way TensorCore sharding only where it can help (v7x megacore);
    # single shard elsewhere so no redundant block fetches on v5e/v6e.
    if num_shards is None:
        num_shards = 2 if (_IS_V7X and nb >= 2) else 1
    num_shards = max(1, min(num_shards, nb))
    steps = -(-nb // num_shards)         # ceil(nb / num_shards)

    def in_map(s, k):
        # Clamp the (possibly) out-of-range last step of the last shard to a
        # valid block; its contribution is masked inside the kernel.
        return (jnp.minimum(s * steps + k, nb - 1), 0)

    partial = pl.pallas_call(
        functools.partial(_custom_loss_kernel, nb=nb),
        out_shape=jax.ShapeDtypeStruct((num_shards, 2), jnp.float32),
        grid_spec=pltpu.PrefetchScalarGridSpec(
            num_scalar_prefetch=0,
            grid=(num_shards, steps),
            in_specs=[
                pl.BlockSpec((block_rows, _LANE), in_map),
                pl.BlockSpec((block_rows, _LANE), in_map),
            ],
            out_specs=pl.BlockSpec(
                (1, 2), lambda s, k: (s, 0), memory_space=pltpu.SMEM
            ),
            scratch_shapes=[
                pltpu.VMEM((_SUBLANE, _LANE), jnp.float32),   # sum((p-r)^2)
                pltpu.VMEM((_SUBLANE, _LANE), jnp.float32),   # sum(r^2)
            ],
        ),
        compiler_params=pltpu.CompilerParams(
            dimension_semantics=("parallel", "arbitrary"),
            vmem_limit_bytes=32 * 1024 * 1024,
        ),
    )(p2, r2)

    sum_d = jnp.sum(partial[:, 0]) + tail_d
    sum_r = jnp.sum(partial[:, 1]) + tail_r
    # sqrt(sum_d/n) / sqrt(sum_r/n) == sqrt(sum_d) / sqrt(sum_r)
    return jnp.sqrt(sum_d) / jnp.sqrt(sum_r)


custom_loss = jax.jit(_custom_loss_impl,
                      static_argnames=("block_elems", "num_shards"))


def _reference(pred, real):
    # Pure-JAX reference mirroring the PyTorch code.
    p0 = pred[0].astype(jnp.float32)
    r0 = real[0].astype(jnp.float32)
    d = p0 - r0
    rms = lambda v: jnp.sqrt(jnp.sum(v * v) / v.shape[0])
    return rms(d) / rms(r0)


if __name__ == "__main__":
    key = jax.random.PRNGKey(0)
    k1, k2 = jax.random.split(key)
    # Small [batch, features]; only row 0 participates.  N is deliberately not
    # a multiple of the block so the prefix-kernel + pure-JAX-tail path runs.
    B, N = 4, 5000
    pred = jax.random.normal(k1, (B, N), dtype=jnp.float32)
    real = jax.random.normal(k2, (B, N), dtype=jnp.float32)
    ref = _reference(pred, real)

    # Default block selection (single block + tail).
    out = jax.block_until_ready(custom_loss(pred, real))
    assert jnp.allclose(out, ref, rtol=1e-5, atol=1e-6), (out, ref)

    # Multi-step reduction path (grid > 1 along the 'arbitrary' axis).
    out2 = jax.block_until_ready(custom_loss(pred, real, block_elems=1024))
    assert jnp.allclose(out2, ref, rtol=1e-5, atol=1e-6), (out2, ref)

    # Two-shard 'parallel' path with an ODD block count: exercises the
    # clamped + masked out-of-range step used for v7x megacore sharding.
    pred3, real3 = pred[:, :3500], real[:, :3500]
    ref3 = _reference(pred3, real3)
    out3 = jax.block_until_ready(
        custom_loss(pred3, real3, block_elems=1024, num_shards=2))
    assert jnp.allclose(out3, ref3, rtol=1e-5, atol=1e-6), (out3, ref3)

    # Tiny-row fallback (n < one vreg block): zero-pad to a single block.
    pred4, real4 = pred[:, :100], real[:, :100]
    ref4 = _reference(pred4, real4)
    out4 = jax.block_until_ready(custom_loss(pred4, real4))
    assert jnp.allclose(out4, ref4, rtol=1e-5, atol=1e-6), (out4, ref4)

    print("KERNEL_OK")
</pallas_src>

<mosaic_0001>
module attributes {stable_mosaic.version = 11 : i64} {
  func.func @_custom_loss_kernel(%arg0: i32, %arg1: i32, %arg2: memref<32x128xf32, #tpu.memory_space<vmem>>, %arg3: memref<32x128xf32, #tpu.memory_space<vmem>>, %arg4: memref<1x2xf32, #tpu.memory_space<smem>>, %arg5: memref<8x128xf32, #tpu.memory_space<vmem>>, %arg6: memref<8x128xf32, #tpu.memory_space<vmem>>) attributes {dimension_semantics = [#tpu.dimension_semantics<parallel>, #tpu.dimension_semantics<arbitrary>], iteration_bounds = array<i64: 1, 1>, scalar_prefetch = 0 : i64, scratch_operands = 2 : i64, tpu.core_type = #tpu.core_type<tc>, window_params = [{transform_indices = @transform_0, window_bounds = array<i64: 32, 128>}, {transform_indices = @transform_1, window_bounds = array<i64: 32, 128>}, {transform_indices = @transform_2, window_bounds = array<i64: 1, 2>}]} {
    %c0_i32 = arith.constant 0 : i32
    %0 = arith.cmpi eq, %arg1, %c0_i32 : i32
    %1 = arith.extui %0 : i1 to i32
    %c0_i32_0 = arith.constant 0 : i32
    %2 = arith.cmpi ne, %1, %c0_i32_0 : i32
    scf.if %2 {
      %cst = arith.constant 0.000000e+00 : f32
      %11 = vector.broadcast %cst : f32 to vector<8x128xf32>
      %c0 = arith.constant 0 : index
      %c0_5 = arith.constant 0 : index
      %12 = vector.load %arg5[%c0, %c0_5] : memref<8x128xf32, #tpu.memory_space<vmem>>, vector<8x128xf32>
      tpu.vector_store %arg5[%c0, %c0_5], %11 {strides = array<i32>} : memref<8x128xf32, #tpu.memory_space<vmem>>, vector<8x128xf32>,
      %cst_6 = arith.constant 0.000000e+00 : f32
      %13 = vector.broadcast %cst_6 : f32 to vector<8x128xf32>
      %c0_7 = arith.constant 0 : index
      %c0_8 = arith.constant 0 : index
      %14 = vector.load %arg6[%c0_7, %c0_8] : memref<8x128xf32, #tpu.memory_space<vmem>>, vector<8x128xf32>
      tpu.vector_store %arg6[%c0_7, %c0_8], %13 {strides = array<i32>} : memref<8x128xf32, #tpu.memory_space<vmem>>, vector<8x128xf32>,
    } else {
    }
    %c1_i32 = arith.constant 1 : i32
    %3 = arith.muli %arg0, %c1_i32 : i32
    %4 = arith.addi %3, %arg1 : i32
    %c1_i32_1 = arith.constant 1 : i32
    %5 = arith.cmpi slt, %4, %c1_i32_1 : i32
    %6 = arith.extui %5 : i1 to i32
    %c0_i32_2 = arith.constant 0 : i32
    %7 = arith.cmpi ne, %6, %c0_i32_2 : i32
    scf.if %7 {
      %c0 = arith.constant 0 : index
      %c0_5 = arith.constant 0 : index
      %11 = vector.load %arg2[%c0, %c0_5] : memref<32x128xf32, #tpu.memory_space<vmem>>, vector<32x128xf32>
      %c0_6 = arith.constant 0 : index
      %c0_7 = arith.constant 0 : index
      %12 = vector.load %arg3[%c0_6, %c0_7] : memref<32x128xf32, #tpu.memory_space<vmem>>, vector<32x128xf32>
      %13 = arith.subf %11, %12 : vector<32x128xf32>
      %c0_8 = arith.constant 0 : index
      %c0_9 = arith.constant 0 : index
      %14 = vector.load %arg5[%c0_8, %c0_9] : memref<8x128xf32, #tpu.memory_space<vmem>>, vector<8x128xf32>
      %15 = arith.mulf %13, %13 : vector<32x128xf32>
      %16 = vector.shape_cast %15 : vector<32x128xf32> to vector<4x8x128xf32>
      %cst = arith.constant dense<0.000000e+00> : vector<8x128xf32>
      %17 = vector.multi_reduction <add>, %16, %cst [0] : vector<4x8x128xf32> to vector<8x128xf32>
      %18 = arith.addf %14, %17 : vector<8x128xf32>
      %c0_10 = arith.constant 0 : index
      %c0_11 = arith.constant 0 : index
      %19 = vector.load %arg5[%c0_10, %c0_11] : memref<8x128xf32, #tpu.memory_space<vmem>>, vector<8x128xf32>
      tpu.vector_store %arg5[%c0_10, %c0_11], %18 {strides = array<i32>} : memref<8x128xf32, #tpu.memory_space<vmem>>, vector<8x128xf32>,
      %c0_12 = arith.constant 0 : index
      %c0_13 = arith.constant 0 : index
      %20 = vector.load %arg6[%c0_12, %c0_13] : memref<8x128xf32, #tpu.memory_space<vmem>>, vector<8x128xf32>
      %21 = arith.mulf %12, %12 : vector<32x128xf32>
      %22 = vector.shape_cast %21 : vector<32x128xf32> to vector<4x8x128xf32>
      %cst_14 = arith.constant dense<0.000000e+00> : vector<8x128xf32>
      %23 = vector.multi_reduction <add>, %22, %cst_14 [0] : vector<4x8x128xf32> to vector<8x128xf32>
      %24 = arith.addf %20, %23 : vector<8x128xf32>
      %c0_15 = arith.constant 0 : index
      %c0_16 = arith.constant 0 : index
      %25 = vector.load %arg6[%c0_15, %c0_16] : memref<8x128xf32, #tpu.memory_space<vmem>>, vector<8x128xf32>
      tpu.vector_store %arg6[%c0_15, %c0_16], %24 {strides = array<i32>} : memref<8x128xf32, #tpu.memory_space<vmem>>, vector<8x128xf32>,
    } else {
    }
    %c0_i32_3 = arith.constant 0 : i32
    %8 = arith.cmpi eq, %arg1, %c0_i32_3 : i32
    %9 = arith.extui %8 : i1 to i32
    %c0_i32_4 = arith.constant 0 : i32
    %10 = arith.cmpi ne, %9, %c0_i32_4 : i32
    scf.if %10 {
      %c0 = arith.constant 0 : index
      %c0_5 = arith.constant 0 : index
      %11 = vector.load %arg5[%c0, %c0_5] : memref<8x128xf32, #tpu.memory_space<vmem>>, vector<8x128xf32>
      %12 = vector.shape_cast %11 : vector<8x128xf32> to vector<1x8x128xf32>
      %cst = arith.constant dense<0.000000e+00> : vector<1xf32>
      %13 = vector.multi_reduction <add>, %12, %cst [1, 2] : vector<1x8x128xf32> to vector<1xf32>
      %14 = vector.shape_cast %13 : vector<1xf32> to vector<1x1x1xf32>
      %15 = vector.extract %14[0, 0, 0] : f32 from vector<1x1x1xf32>
      %c0_6 = arith.constant 0 : index
      %c0_7 = arith.constant 0 : index
      %16 = memref.load %arg4[%c0_6, %c0_7] : memref<1x2xf32, #tpu.memory_space<smem>>
      memref.store %15, %arg4[%c0_6, %c0_7] : memref<1x2xf32, #tpu.memory_space<smem>>
      %c0_8 = arith.constant 0 : index
      %c0_9 = arith.constant 0 : index
      %17 = vector.load %arg6[%c0_8, %c0_9] : memref<8x128xf32, #tpu.memory_space<vmem>>, vector<8x128xf32>
      %18 = vector.shape_cast %17 : vector<8x128xf32> to vector<1x8x128xf32>
      %cst_10 = arith.constant dense<0.000000e+00> : vector<1xf32>
      %19 = vector.multi_reduction <add>, %18, %cst_10 [1, 2] : vector<1x8x128xf32> to vector<1xf32>
      %20 = vector.shape_cast %19 : vector<1xf32> to vector<1x1x1xf32>
      %21 = vector.extract %20[0, 0, 0] : f32 from vector<1x1x1xf32>
      %c0_11 = arith.constant 0 : index
      %c1 = arith.constant 1 : index
      %22 = memref.load %arg4[%c0_11, %c1] : memref<1x2xf32, #tpu.memory_space<smem>>
      memref.store %21, %arg4[%c0_11, %c1] : memref<1x2xf32, #tpu.memory_space<smem>>
    } else {
    }
    return
  }
  func.func @transform_0(%arg0: i32, %arg1: i32) -> (i32, i32) {
    %c1_i32 = arith.constant 1 : i32
    %0 = arith.muli %arg0, %c1_i32 : i32
    %1 = arith.addi %0, %arg1 : i32
    %c0_i32 = arith.constant 0 : i32
    %2 = arith.minsi %1, %c0_i32 : i32
    %c0_i32_0 = arith.constant 0 : i32
    %c0_i32_1 = arith.constant 0 : i32
    return %2, %c0_i32_0 : i32, i32
  }
  func.func @transform_1(%arg0: i32, %arg1: i32) -> (i32, i32) {
    %c1_i32 = arith.constant 1 : i32
    %0 = arith.muli %arg0, %c1_i32 : i32
    %1 = arith.addi %0, %arg1 : i32
    %c0_i32 = arith.constant 0 : i32
    %2 = arith.minsi %1, %c0_i32 : i32
    %c0_i32_0 = arith.constant 0 : i32
    %c0_i32_1 = arith.constant 0 : i32
    return %2, %c0_i32_0 : i32, i32
  }
  func.func @transform_2(%arg0: i32, %arg1: i32) -> (i32, i32) {
    %c0_i32 = arith.constant 0 : i32
    %c0_i32_0 = arith.constant 0 : i32
    return %arg0, %c0_i32 : i32, i32
  }
}

</mosaic_0001>

<llo_original>
// kernel: _custom_loss_impl.1
$region0: #{_custom_loss_impl.1}
  #allocation0 [shape = 'u32[]', space=smem, size = 0x4, offset = 0x4, fixed_abs, tag = 'smem constant byte address 0x4 - core index']
  #allocation1 [shape = 'u32[144,128]{1,0:T(1,128)}', space=vmem, size = 0x12000, scoped, tag = 'internal scratch']
  #allocation2 [shape = 'f32[8,128]{1,0:T(8,128)}', space=vmem, size = 0x1000, scoped, tag = 'scratch operand']
  #allocation3 [shape = 'f32[8,128]{1,0:T(8,128)}', space=vmem, size = 0x1000, scoped, tag = 'scratch operand']
  %s0 = inlined_call_operand.vmem [shape: f32[32,128], index: 0, kind: input, shape index: {}]
  %s1 = inlined_call_operand.vmem [shape: f32[32,128], index: 1, kind: input, shape index: {}]
  %s2 = inlined_call_operand.vmem [shape: f32[1,2], index: 2, kind: output, shape index: {}]
  %s3 = sld [smem:[#allocation0]]
  $region30: #{_custom_loss_impl.1} parent=0
    _
  %s5 = ssub.s32 1, %s3
  %s6 = scalar_select 0, %s5, %s3
  $region1: #{_custom_loss_impl.1} parent=0
    #allocation4 [shape = 'u8[512]{0}', space=smem, size = 0x200, scoped, tag = 'output window, operand 0, single buffered']
    #allocation5 [shape = 's32[1]{0}', space=sflag, size = 0x4, scoped, tag = 'scoped memory for _custom_loss_impl.1']
    %7 = vsyncpa [#allocation5], 0
    // Predicated region
    $region2: #{_custom_loss_impl.1} parent=1 // pred_check
      _
    $region3: #{_custom_loss_impl.1} parent=1 // pred_check_branch
      %9 = sbr.rel (0) target = $region5
    $region4: #{_custom_loss_impl.1} parent=1 // pred_region
      %s10 = sadd.s32 0, 0
      %p11 = scmp.lt.s32.totalorder %s10, 0
      %s12 = scalar_select %p11, %s10, 0
      %s13 = smul.u32 4, %s12
      %p14 = scmp.lt.s32.totalorder %s13, 3
      %s15 = scalar_select %p14, %s13, 3
      %s16 = smul.addr %s15, 8
      %s17 = scalar_lea.vmem %s0, %s16
      %s18 = sadd.s32 0, 0
      %p19 = scmp.lt.s32.totalorder %s18, 0
      %s20 = scalar_select %p19, %s18, 0
      %s21 = smul.u32 4, %s20
    $region5: #{_custom_loss_impl.1} parent=1 // pred_fallthru
      _
    // Predicated region
    $region6: #{_custom_loss_impl.1} parent=1 // pred_check
      _
    $region7: #{_custom_loss_impl.1} parent=1 // pred_check_branch
      %23 = sbr.rel (0) target = $region9
    $region8: #{_custom_loss_impl.1} parent=1 // pred_region
      %s24 = sadd.s32 0, 0
      %p25 = scmp.lt.s32.totalorder %s24, 0
      %s26 = scalar_select %p25, %s24, 0
      %s27 = smul.u32 4, %s26
      %p28 = scmp.lt.s32.totalorder %s27, 3
      %s29 = scalar_select %p28, %s27, 3
      %s30 = smul.addr %s29, 8
      %s31 = scalar_lea.vmem %s1, %s30
      %s32 = sadd.s32 0, 0
      %p33 = scmp.lt.s32.totalorder %s32, 0
      %s34 = scalar_select %p33, %s32, 0
      %s35 = smul.u32 4, %s34
    $region9: #{_custom_loss_impl.1} parent=1 // pred_fallthru
      _
    %s36 = sadd.s32 0, 0
    %p37 = scmp.lt.s32.totalorder %s36, 0
    %s38 = scalar_select %p37, %s36, 0
    %s39 = smul.u32 4, %s38
    %p40 = scmp.lt.s32.totalorder %s39, 3
    %s41 = scalar_select %p40, %s39, 3
    %s42 = smul.addr %s41, 8
    %s43 = scalar_lea.vmem %s0, %s42
    %s44 = sadd.s32 0, 0
    %p45 = scmp.lt.s32.totalorder %s44, 0
    %s46 = scalar_select %p45, %s44, 0
    %s47 = smul.u32 4, %s46
    %p48 = scmp.lt.s32.totalorder %s47, 3
    %s49 = scalar_select %p48, %s47, 3
    %s50 = smul.addr %s49, 8
    %s51 = scalar_lea.vmem %s1, %s50
    %s52 = sadd.s32 0, 0
    %p53 = scmp.lt.s32.totalorder %s52, 0
    %s54 = scalar_select %p53, %s52, 0
    %s55 = smul.u32 4, %s54
    %p56 = scmp.lt.s32.totalorder %s55, 3
    %s57 = scalar_select %p56, %s55, 3
    %s58 = smul.addr %s57, 8
    %s59 = scalar_lea.vmem %s0, %s58
    %s60 = sadd.s32 0, 0
    %p61 = scmp.lt.s32.totalorder %s60, 0
    %s62 = scalar_select %p61, %s60, 0
    %s63 = smul.u32 4, %s62
    %s64 = sadd.s32 0, 0
    %p65 = scmp.lt.s32.totalorder %s64, 0
    %s66 = scalar_select %p65, %s64, 0
    %s67 = smul.u32 4, %s66
    %p68 = scmp.lt.s32.totalorder %s67, 3
    %s69 = scalar_select %p68, %s67, 3
    %s70 = smul.addr %s69, 8
    %s71 = scalar_lea.vmem %s1, %s70
    %s72 = sadd.s32 0, 0
    %p73 = scmp.lt.s32.totalorder %s72, 0
    %s74 = scalar_select %p73, %s72, 0
    %s75 = smul.u32 4, %s74
    %p76 = scmp.eq.s32.totalorder 0, 0
    // Predicated region
    $region10: #{_custom_loss_impl.1} parent=1 // pred_check
      %p77 = pneg %p76
    $region11: #{_custom_loss_impl.1} parent=1 // pred_check_branch
      %79 = sbr.rel (%p77) target = $region13
    $region12: #{_custom_loss_impl.1} parent=1 // pred_region
      %80 = vst [vmem:[#allocation2] sm:$0xff] 0.0
      %81 = vst [vmem:[#allocation3] sm:$0xff] 0.0
    $region13: #{_custom_loss_impl.1} parent=1 // pred_fallthru
      _
    %s82 = sadd.s32 0, 0
    %p83 = scmp.lt.s32.totalorder %s82, 1
    // Predicated region
    $region14: #{_custom_loss_impl.1} parent=1 // pred_check
      %p84 = pneg %p83
    $region15: #{_custom_loss_impl.1} parent=1 // pred_check_branch
      %86 = sbr.rel (%p84) target = $region17
    $region16: #{_custom_loss_impl.1} parent=1 // pred_region
      %v87 = vld [vmem:[%s59] sm:$0xff]
      %v88 = vld [vmem:[%s59 + $0x8] sm:$0xff]
      %v89 = vld [vmem:[%s59 + $0x10] sm:$0xff]
      %v90 = vld [vmem:[%s59 + $0x18] sm:$0xff]
      %v91 = vld [vmem:[%s71] sm:$0xff]
      %v92 = vld [vmem:[%s71 + $0x8] sm:$0xff]
      %v93 = vld [vmem:[%s71 + $0x10] sm:$0xff]
      %v94 = vld [vmem:[%s71 + $0x18] sm:$0xff]
      %v95 = vsub.f32 %v87, %v91
      %v96 = vsub.f32 %v88, %v92
      %v97 = vsub.f32 %v89, %v93
      %v98 = vsub.f32 %v90, %v94
      %v99 = vld [vmem:[#allocation2] sm:$0xff]
      %v100 = vmul.f32 %v95, %v95
      %v101 = vmul.f32 %v96, %v96
      %v102 = vmul.f32 %v97, %v97
      %v103 = vmul.f32 %v98, %v98
      %v104 = vadd.f32 %v100, %v101
      %v105 = vadd.f32 %v104, %v102
      %v106 = vadd.f32 %v105, %v103
      %v107 = vadd.f32 %v99, %v106
      %108 = vst [vmem:[#allocation2] sm:$0xff] %v107
      %v109 = vld [vmem:[#allocation3] sm:$0xff]
      %v110 = vmul.f32 %v91, %v91
      %v111 = vmul.f32 %v92, %v92
      %v112 = vmul.f32 %v93, %v93
      %v113 = vmul.f32 %v94, %v94
      %v114 = vadd.f32 %v110, %v111
      %v115 = vadd.f32 %v114, %v112
      %v116 = vadd.f32 %v115, %v113
      %v117 = vadd.f32 %v109, %v116
      %118 = vst [vmem:[#allocation3] sm:$0xff] %v117
    $region17: #{_custom_loss_impl.1} parent=1 // pred_fallthru
      _
    // Predicated region
    $region18: #{_custom_loss_impl.1} parent=1 // pred_check
      %p119 = pneg %p76
    $region19: #{_custom_loss_impl.1} parent=1 // pred_check_branch
      %121 = sbr.rel (%p119) target = $region21
    $region20: #{_custom_loss_impl.1} parent=1 // pred_region
      %v122 = vld [vmem:[#allocation2] sm:$0xff]
      %123 = vadd.xlane.f32.xlu0 %v122
      %v124 = vpop.xlane.xlu0 %123
      %v125 = vrot.slane %v124, 4
      %v126 = vadd.f32 %v124, %v125
      %v127 = vrot.slane %v126, 2
      %v128 = vadd.f32 %v126, %v127
      %v129 = vrot.slane %v128, 1
      %v130 = vadd.f32 %v128, %v129
      %s131 = vtos %v130
      %s132 = scalar_lea.smem [#allocation4], 0
      %133 = sst [smem:[%s132]] %s131
      %v134 = vld [vmem:[#allocation3] sm:$0xff]
      %135 = vadd.xlane.f32.xlu0 %v134
      %v136 = vpop.xlane.xlu0 %135
      %v137 = vrot.slane %v136, 4
      %v138 = vadd.f32 %v136, %v137
      %v139 = vrot.slane %v138, 2
      %v140 = vadd.f32 %v138, %v139
      %v141 = vrot.slane %v140, 1
      %v142 = vadd.f32 %v140, %v141
      %s143 = vtos %v142
      %s144 = scalar_lea.smem [#allocation4], 1
      %145 = sst [smem:[%s144]] %s143
    $region21: #{_custom_loss_impl.1} parent=1 // pred_fallthru
      _
    // Predicated region
    $region22: #{_custom_loss_impl.1} parent=1 // pred_check
      _
    $region23: #{_custom_loss_impl.1} parent=1 // pred_check_branch
      %147 = sbr.rel (0) target = $region25
    $region24: #{_custom_loss_impl.1} parent=1 // pred_region
      %s149 = ssub.s32 16, 16
      %150 = vsyncadd [#allocation5], %s149
      %s152 = sshll.u32 %s2, 4
      %s153 = int_to_ptr.vmem [resolvable:$true] %s152
      %155 = dma.smem_to_vmem [#allocation4], 16, %s153, [#allocation5]
    $region25: #{_custom_loss_impl.1} parent=1 // pred_fallthru
      _
    // Predicated region
    $region26: #{_custom_loss_impl.1} parent=1 // pred_check
      _
    $region27: #{_custom_loss_impl.1} parent=1 // pred_check_branch
      %157 = sbr.rel (0) target = $region29
    $region28: #{_custom_loss_impl.1} parent=1 // pred_region
      %158 = dma.done [#allocation5], 16
    $region29: #{_custom_loss_impl.1} parent=1 // pred_fallthru
      _
    %159 = sfence
    %160 = vsyncpa [#allocation5], 1

</llo_original>
